<compile_context>
chip_gen: v7x
topology: tpu7x:2x2x1
jax: 0.10.0
libtpu: 0.0.40
codegen_flags: <defaults>
</compile_context>

<pallas_src>
import math

import numpy as np
import jax
import jax.numpy as jnp
from jax.experimental import pallas as pl
from jax.experimental.pallas import tpu as pltpu

LANE = 128
BF16_SUBLANE = 16      # bf16 packs 2 rows per sublane -> round batch tiles to 16
MAX_BATCH_TILE = 256   # 256-row tiles fill the v6e/v7x MXU and cap VMEM use


def _round_up(n, m):
    return ((n + m - 1) // m) * m


def init_mlp_params(key, input_shape, hidden_size, output_shape, dtype=jnp.float32):
    """torch.nn.Linear-style init U(-1/sqrt(fan_in), 1/sqrt(fan_in)).
    Weights stored as (in_dim, out_dim) (transposed vs. PyTorch)."""
    if isinstance(hidden_size, int):
        hidden_size = [hidden_size]
    shapes = [input_shape] + list(hidden_size) + [output_shape]
    params = []
    for in_dim, out_dim in zip(shapes[:-1], shapes[1:]):
        key, kw, kb = jax.random.split(key, 3)
        bound = 1.0 / math.sqrt(in_dim)
        w = jax.random.uniform(kw, (in_dim, out_dim), dtype, minval=-bound, maxval=bound)
        b = jax.random.uniform(kb, (out_dim,), dtype, minval=-bound, maxval=bound)
        params.append((w, b))
    return params


def pack_mlp_params(params, tile=None):
    """One-time packing.

    Each layer's weight is zero-padded to (round_up(d_in, T), round_up(d_out, T))
    and chopped into (T, T) tiles, stacked in schedule order:
        for layer l: for each output tile ni: for each input tile ki.
    Zero-padding is semantics-preserving (padded bias lanes are 0, ReLU(0)=0, so
    padded lanes stay exactly 0 through the whole stack).

    Returns bf16 weight tiles (MXU-native), f32 bias tiles, and the int32
    schedule arrays consumed via scalar prefetch.
    """
    dims = [params[0][0].shape[0]] + [w.shape[1] for w, _ in params]
    if tile is None:
        # 256-wide tiles fill the 2x256x256 MXU on v6e/v7x; fall back to 128
        # (v5e-native) when layer widths are small enough that 256 mostly pads.
        tile = 256 if max(dims) >= 256 else 128
    tk = tn = tile
    n_layers = len(params)

    d_in_pad = [_round_up(w.shape[0], tk) for w, _ in params]
    d_out_pad = [_round_up(w.shape[1], tn) for w, _ in params]

    w_tiles = []
    b_rows = []
    ki_l, ni_l, par_l, lastk_l, lastlayer_l, biasid_l = [], [], [], [], [], []
    bias_base = 0
    for l, (w, b) in enumerate(params):
        din, dout = w.shape
        wp = np.zeros((d_in_pad[l], d_out_pad[l]), np.float32)
        wp[:din, :dout] = np.asarray(w, np.float32)
        bp = np.zeros((d_out_pad[l],), np.float32)
        bp[:dout] = np.asarray(b, np.float32)

        nk = d_in_pad[l] // tk
        nn_ = d_out_pad[l] // tn
        for ni in range(nn_):
            b_rows.append(bp[ni * tn:(ni + 1) * tn])
            for ki in range(nk):
                w_tiles.append(wp[ki * tk:(ki + 1) * tk, ni * tn:(ni + 1) * tn])
                ki_l.append(ki)
                ni_l.append(ni)
                par_l.append(l % 2)                       # ping-pong input slot
                lastk_l.append(1 if ki == nk - 1 else 0)
                lastlayer_l.append(1 if l == n_layers - 1 else 0)
                biasid_l.append(bias_base + ni)
        bias_base += nn_

    packed = {
        "w": jnp.asarray(np.stack(w_tiles), jnp.bfloat16),            # (T, tk, tn)
        "b": jnp.asarray(np.stack(b_rows)[:, None, :], jnp.float32),  # (NB, 1, tn)
        "ki": jnp.asarray(ki_l, jnp.int32),
        "ni": jnp.asarray(ni_l, jnp.int32),
        "par": jnp.asarray(par_l, jnp.int32),
        "last_k": jnp.asarray(lastk_l, jnp.int32),
        "last_layer": jnp.asarray(lastlayer_l, jnp.int32),
        "bias_id": jnp.asarray(biasid_l, jnp.int32),
        "tk": tk,
        "tn": tn,
        "d_in": dims[0],
        "d_out": dims[-1],
        "d_in_pad0": d_in_pad[0],
        "d_out_pad_last": d_out_pad[-1],
        "d_max_pad": max(max(d_in_pad), max(d_out_pad)),
        "num_steps": len(w_tiles),
    }
    return packed


def _make_mlp_kernel(bm, tk, tn, d_in_pad0):
    """Kernel for one (batch-tile, weight-tile) grid step of the fused MLP.

    Args (after the 6 scalar-prefetch SMEM refs):
      x_ref   : (bm, d_in_pad0)  bf16  input batch tile
      w_ref   : (1, tk, tn)      bf16  current weight tile
      b_ref   : (1, 1, tn)       f32   current (layer, n-tile) bias
      o_ref   : (bm, d_out_pad)  f32   lane-dense output block (resident)
      act_ref : (2*bm, d_max)    bf16  ping-pong activation scratch
      acc_ref : (bm, tn)         f32   K-reduction accumulator
    """

    def kernel(ki_ref, ni_ref, par_ref, lastk_ref, lastlayer_ref, biasid_ref,
               x_ref, w_ref, b_ref, o_ref, act_ref, acc_ref):
        s = pl.program_id(1)
        ki = ki_ref[s]
        ni = ni_ref[s]
        par = par_ref[s]
        is_last_k = lastk_ref[s] == 1
        is_last_layer = lastlayer_ref[s] == 1

        # Load this batch tile's input into ping-pong slot 0 once per batch tile.
        @pl.when(s == 0)
        def _():
            act_ref[0:bm, 0:d_in_pad0] = x_ref[...]

        # Current layer's input lives in slot `par`; take its ki-th K tile.
        row_in = pl.multiple_of(par * bm, BF16_SUBLANE)
        col_in = pl.multiple_of(ki * tk, tk)
        a = act_ref[pl.ds(row_in, bm), pl.ds(col_in, tk)]      # (bm, tk) bf16

        @pl.when(ki == 0)
        def _():
            acc_ref[...] = jnp.zeros_like(acc_ref)

        # bf16 MXU matmul, f32 accumulation across K tiles.
        acc_ref[...] += jnp.dot(a, w_ref[0], preferred_element_type=jnp.float32)

        @pl.when(is_last_k)
        def _():
            # f32 epilogue: bias + ReLU (ReLU follows EVERY Linear, incl. last).
            y = jnp.maximum(acc_ref[...] + b_ref[0], 0.0)      # (bm, tn) f32
            col_out = pl.multiple_of(ni * tn, tn)

            @pl.when(jnp.logical_not(is_last_layer))
            def _():
                # Carry activation (bf16) into the other ping-pong slot.
                row_out = pl.multiple_of((1 - par) * bm, BF16_SUBLANE)
                act_ref[pl.ds(row_out, bm), pl.ds(col_out, tn)] = (
                    y.astype(act_ref.dtype))

            @pl.when(is_last_layer)
            def _():
                # Last layer: store straight to the lane-dense output block and
                # skip the redundant activation writeback.
                o_ref[:, pl.ds(col_out, tn)] = y.astype(o_ref.dtype)

    return kernel


def _mlp_pallas(x_pad, packed, bm):
    """Fused MLP over padded, lane-dense operands."""
    tk, tn = packed["tk"], packed["tn"]
    d0 = packed["d_in_pad0"]
    dl = packed["d_out_pad_last"]
    dmax = packed["d_max_pad"]
    n_steps = packed["num_steps"]
    b_pad = x_pad.shape[0]
    grid = (b_pad // bm, n_steps)

    # Explicit VMEM budget (double-buffered operands + scratch); keep headroom
    # and stay under v7x's 64 MiB physical VMEM.
    budget = (2 * tk * tn * 2          # weight tile, bf16, double-buffered
              + 2 * tn * 4             # bias tile
              + 2 * bm * d0 * 2        # x tile, bf16
              + 2 * bm * dl * 4        # output tile, f32
              + 2 * bm * dmax * 2      # activation ping-pong scratch, bf16
              + bm * tn * 4)           # f32 accumulator
    vmem_limit = int(min(max(budget + (8 << 20), 16 << 20), 60 << 20))

    kernel = _make_mlp_kernel(bm, tk, tn, d0)

    return pl.pallas_call(
        kernel,
        out_shape=jax.ShapeDtypeStruct((b_pad, dl), jnp.float32),
        grid_spec=pltpu.PrefetchScalarGridSpec(
            num_scalar_prefetch=6,
            grid=grid,
            in_specs=[
                # x: constant block across the step axis -> fetched once per
                # batch tile.
                pl.BlockSpec((bm, d0),
                             lambda i, s, ki, ni, par, lk, ll, bid: (i, 0)),
                # Weight tiles are stacked in schedule order -> step selects.
                pl.BlockSpec((1, tk, tn),
                             lambda i, s, ki, ni, par, lk, ll, bid: (s, 0, 0)),
                # Bias tile for the current (layer, n-tile) via prefetched ids.
                pl.BlockSpec((1, 1, tn),
                             lambda i, s, ki, ni, par, lk, ll, bid: (bid[s], 0, 0)),
            ],
            out_specs=pl.BlockSpec((bm, dl),
                                   lambda i, s, ki, ni, par, lk, ll, bid: (i, 0)),
            scratch_shapes=[
                pltpu.VMEM((2 * bm, dmax), jnp.bfloat16),   # activation ping-pong
                pltpu.VMEM((bm, tn), jnp.float32),          # K accumulator
            ],
        ),
        compiler_params=pltpu.CompilerParams(
            # Batch tiles are independent (megacore-shardable on v7x; no-op on
            # single-TC v5e/v6e).  The step axis carries the activation /
            # accumulator scratch -> arbitrary.  Note: dual-TC only engages for
            # batch > bm; an N-split across TCs (VMEM_SHARED activation
            # exchange) is not implemented here.
            dimension_semantics=("parallel", "arbitrary"),
            vmem_limit_bytes=vmem_limit,
        ),
    )(packed["ki"], packed["ni"], packed["par"], packed["last_k"],
      packed["last_layer"], packed["bias_id"],
      x_pad, packed["w"], packed["b"])


def mlp_forward(x, packed):
    """Forward pass matching MLP.forward: relu(... relu(relu(x W1 + b1) W2 + b2) ...)."""
    batch, d_in = x.shape
    assert d_in == packed["d_in"]

    # bf16-aware batch tile (16 sublane rows), capped at 256 so the weight stack
    # streams once for batch <= 256 and 256-row tiles fill the v6e/v7x MXU;
    # larger batches shard across the parallel grid axis.
    bm = min(MAX_BATCH_TILE, _round_up(batch, BF16_SUBLANE))
    b_pad = _round_up(batch, bm)

    x_pad = jnp.zeros((b_pad, packed["d_in_pad0"]), jnp.bfloat16)
    x_pad = x_pad.at[:batch, :d_in].set(x.astype(jnp.bfloat16))

    out_pad = _mlp_pallas(x_pad, packed, bm)
    # NOTE: padded batch rows hold ReLU(bias) garbage and padded feature lanes
    # hold zeros; both are sliced away here — never reduce over out_pad directly.
    return out_pad[:batch, :packed["d_out"]].astype(x.dtype)


if __name__ == "__main__":
    key = jax.random.PRNGKey(0)
    k_x, k_p = jax.random.split(key)

    batch = 8
    input_shape = 16
    hidden_size = [32, 160]   # second hidden > 128 exercises multi-K/N tiling
    output_shape = 8

    x = jax.random.normal(k_x, (batch, input_shape), dtype=jnp.float32)
    params = init_mlp_params(k_p, input_shape, hidden_size, output_shape)
    packed = pack_mlp_params(params)

    out = jax.block_until_ready(mlp_forward(x, packed))

    # Reference with matching numerics: bf16-cast inputs/weights, f32 accumulate,
    # activations carried in bf16 between layers, final layer kept in f32.
    ref = x.astype(jnp.bfloat16).astype(jnp.float32)
    for l, (w, b) in enumerate(params):
        w_bf = w.astype(jnp.bfloat16).astype(jnp.float32)
        ref = jnp.maximum(ref @ w_bf + b, 0.0)
        if l < len(params) - 1:
            ref = ref.astype(jnp.bfloat16).astype(jnp.float32)

    assert out.shape == (batch, output_shape)
    assert jnp.allclose(out, ref, atol=2e-2, rtol=2e-2), (
        f"max abs err = {float(jnp.max(jnp.abs(out - ref)))}")

    print("KERNEL_OK")
</pallas_src>

<mosaic_0001>
module attributes {stable_mosaic.version = 11 : i64} {
  func.func @kernel(%arg0: i32, %arg1: i32, %arg2: memref<5xi32, #tpu.memory_space<smem>>, %arg3: memref<5xi32, #tpu.memory_space<smem>>, %arg4: memref<5xi32, #tpu.memory_space<smem>>, %arg5: memref<5xi32, #tpu.memory_space<smem>>, %arg6: memref<5xi32, #tpu.memory_space<smem>>, %arg7: memref<5xi32, #tpu.memory_space<smem>>, %arg8: memref<16x128xbf16, #tpu.memory_space<vmem>>, %arg9: memref<1x128x128xbf16, #tpu.memory_space<vmem>>, %arg10: memref<1x1x128xf32, #tpu.memory_space<vmem>>, %arg11: memref<16x128xf32, #tpu.memory_space<vmem>>, %arg12: memref<32x256xbf16, #tpu.memory_space<vmem>>, %arg13: memref<16x128xf32, #tpu.memory_space<vmem>>) attributes {dimension_semantics = [#tpu.dimension_semantics<parallel>, #tpu.dimension_semantics<arbitrary>], iteration_bounds = array<i64: 1, 5>, scalar_prefetch = 6 : i64, scratch_operands = 2 : i64, tpu.core_type = #tpu.core_type<tc>, window_params = [{transform_indices = @transform_0, window_bounds = array<i64: 16, 128>}, {transform_indices = @transform_1, window_bounds = array<i64: 1, 128, 128>}, {transform_indices = @transform_2, window_bounds = array<i64: 1, 1, 128>}, {transform_indices = @transform_3, window_bounds = array<i64: 16, 128>}]} {
    %0 = arith.index_cast %arg1 : i32 to index
    %1 = memref.load %arg2[%0] : memref<5xi32, #tpu.memory_space<smem>>
    %2 = arith.index_cast %arg1 : i32 to index
    %3 = memref.load %arg3[%2] : memref<5xi32, #tpu.memory_space<smem>>
    %4 = arith.index_cast %arg1 : i32 to index
    %5 = memref.load %arg4[%4] : memref<5xi32, #tpu.memory_space<smem>>
    %6 = arith.index_cast %arg1 : i32 to index
    %7 = memref.load %arg5[%6] : memref<5xi32, #tpu.memory_space<smem>>
    %c1_i32 = arith.constant 1 : i32
    %8 = arith.cmpi eq, %7, %c1_i32 : i32
    %9 = arith.index_cast %arg1 : i32 to index
    %10 = memref.load %arg6[%9] : memref<5xi32, #tpu.memory_space<smem>>
    %c1_i32_0 = arith.constant 1 : i32
    %11 = arith.cmpi eq, %10, %c1_i32_0 : i32
    %c0_i32 = arith.constant 0 : i32
    %12 = arith.cmpi eq, %arg1, %c0_i32 : i32
    %13 = arith.extui %12 : i1 to i32
    %c0_i32_1 = arith.constant 0 : i32
    %14 = arith.cmpi ne, %13, %c0_i32_1 : i32
    scf.if %14 {
      %c0_11 = arith.constant 0 : index
      %c0_12 = arith.constant 0 : index
      %33 = vector.load %arg8[%c0_11, %c0_12] : memref<16x128xbf16, #tpu.memory_space<vmem>>, vector<16x128xbf16>
      %c0_13 = arith.constant 0 : index
      %c0_14 = arith.constant 0 : index
      %34 = vector.load %arg12[%c0_13, %c0_14] : memref<32x256xbf16, #tpu.memory_space<vmem>>, vector<16x128xbf16>
      tpu.vector_store %arg12[%c0_13, %c0_14], %33 {strides = array<i32>} : memref<32x256xbf16, #tpu.memory_space<vmem>>, vector<16x128xbf16>,
    } else {
    }
    %c16_i32 = arith.constant 16 : i32
    %15 = arith.muli %5, %c16_i32 : i32
    %16 = tpu.assume_multiple %15, 16 : i32
    %c128_i32 = arith.constant 128 : i32
    %17 = arith.muli %1, %c128_i32 : i32
    %18 = tpu.assume_multiple %17, 128 : i32
    %19 = arith.index_cast %16 : i32 to index
    %20 = arith.index_cast %18 : i32 to index
    %21 = vector.load %arg12[%19, %20] : memref<32x256xbf16, #tpu.memory_space<vmem>>, vector<16x128xbf16>
    %c0_i32_2 = arith.constant 0 : i32
    %22 = arith.cmpi eq, %1, %c0_i32_2 : i32
    %23 = arith.extui %22 : i1 to i32
    %c0_i32_3 = arith.constant 0 : i32
    %24 = arith.cmpi ne, %23, %c0_i32_3 : i32
    scf.if %24 {
      %cst_11 = arith.constant 0.000000e+00 : f32
      %33 = vector.broadcast %cst_11 : f32 to vector<16x128xf32>
      %c0_12 = arith.constant 0 : index
      %c0_13 = arith.constant 0 : index
      %34 = vector.load %arg13[%c0_12, %c0_13] : memref<16x128xf32, #tpu.memory_space<vmem>>, vector<16x128xf32>
      tpu.vector_store %arg13[%c0_12, %c0_13], %33 {strides = array<i32>} : memref<16x128xf32, #tpu.memory_space<vmem>>, vector<16x128xf32>,
    } else {
    }
    %c0 = arith.constant 0 : index
    %c0_4 = arith.constant 0 : index
    %25 = vector.load %arg13[%c0, %c0_4] : memref<16x128xf32, #tpu.memory_space<vmem>>, vector<16x128xf32>
    %c0_5 = arith.constant 0 : index
    %c0_6 = arith.constant 0 : index
    %c0_7 = arith.constant 0 : index
    %26 = vector.load %arg9[%c0_5, %c0_6, %c0_7] : memref<1x128x128xbf16, #tpu.memory_space<vmem>>, vector<1x128x128xbf16>
    %27 = vector.shape_cast %26 : vector<1x128x128xbf16> to vector<128x128xbf16>
    %cst = arith.constant dense<0.000000e+00> : vector<16x128xf32>
    %28 = tpu.matmul %21, %27, %cst {dimension_numbers = #tpu.dot_dimension_numbers<[1], [0], [0], [1], [0, 0, 1, 1], [], []>} : vector<16x128xbf16>, vector<128x128xbf16>, vector<16x128xf32> -> vector<16x128xf32>
    %29 = arith.addf %25, %28 : vector<16x128xf32>
    %c0_8 = arith.constant 0 : index
    %c0_9 = arith.constant 0 : index
    %30 = vector.load %arg13[%c0_8, %c0_9] : memref<16x128xf32, #tpu.memory_space<vmem>>, vector<16x128xf32>
    tpu.vector_store %arg13[%c0_8, %c0_9], %29 {strides = array<i32>} : memref<16x128xf32, #tpu.memory_space<vmem>>, vector<16x128xf32>,
    %31 = arith.extui %8 : i1 to i32
    %c0_i32_10 = arith.constant 0 : i32
    %32 = arith.cmpi ne, %31, %c0_i32_10 : i32
    scf.if %32 {
      %c0_11 = arith.constant 0 : index
      %c0_12 = arith.constant 0 : index
      %33 = vector.load %arg13[%c0_11, %c0_12] : memref<16x128xf32, #tpu.memory_space<vmem>>, vector<16x128xf32>
      %c0_13 = arith.constant 0 : index
      %c0_14 = arith.constant 0 : index
      %c0_15 = arith.constant 0 : index
      %34 = vector.load %arg10[%c0_13, %c0_14, %c0_15] : memref<1x1x128xf32, #tpu.memory_space<vmem>>, vector<1x1x128xf32>
      %35 = vector.shape_cast %34 : vector<1x1x128xf32> to vector<1x128xf32>
      %36 = vector.broadcast %35 : vector<1x128xf32> to vector<16x128xf32>
      %37 = arith.addf %33, %36 : vector<16x128xf32>
      %cst_16 = arith.constant 0.000000e+00 : f32
      %38 = vector.broadcast %cst_16 : f32 to vector<16x128xf32>
      %39 = arith.maximumf %37, %38 : vector<16x128xf32>
      %c128_i32_17 = arith.constant 128 : i32
      %40 = arith.muli %3, %c128_i32_17 : i32
      %41 = tpu.assume_multiple %40, 128 : i32
      %true = arith.constant true
      %42 = arith.xori %11, %true : i1
      %43 = arith.extui %42 : i1 to i32
      %c0_i32_18 = arith.constant 0 : i32
      %44 = arith.cmpi ne, %43, %c0_i32_18 : i32
      scf.if %44 {
        %c1_i32_20 = arith.constant 1 : i32
        %47 = arith.subi %c1_i32_20, %5 : i32
        %c16_i32_21 = arith.constant 16 : i32
        %48 = arith.muli %47, %c16_i32_21 : i32
        %49 = tpu.assume_multiple %48, 16 : i32
        %50 = arith.truncf %39 : vector<16x128xf32> to vector<16x128xbf16>
        %51 = arith.index_cast %49 : i32 to index
        %52 = arith.index_cast %41 : i32 to index
        %53 = vector.load %arg12[%51, %52] : memref<32x256xbf16, #tpu.memory_space<vmem>>, vector<16x128xbf16>
        tpu.vector_store %arg12[%51, %52], %50 {strides = array<i32>} : memref<32x256xbf16, #tpu.memory_space<vmem>>, vector<16x128xbf16>,
      } else {
      }
      %45 = arith.extui %11 : i1 to i32
      %c0_i32_19 = arith.constant 0 : i32
      %46 = arith.cmpi ne, %45, %c0_i32_19 : i32
      scf.if %46 {
        %c0_20 = arith.constant 0 : index
        %47 = arith.index_cast %41 : i32 to index
        %48 = vector.load %arg11[%c0_20, %47] : memref<16x128xf32, #tpu.memory_space<vmem>>, vector<16x128xf32>
        tpu.vector_store %arg11[%c0_20, %47], %39 {strides = array<i32>} : memref<16x128xf32, #tpu.memory_space<vmem>>, vector<16x128xf32>,
      } else {
      }
    } else {
    }
    return
  }
  func.func @transform_0(%arg0: i32, %arg1: i32, %arg2: memref<5xi32, #tpu.memory_space<smem>>, %arg3: memref<5xi32, #tpu.memory_space<smem>>, %arg4: memref<5xi32, #tpu.memory_space<smem>>, %arg5: memref<5xi32, #tpu.memory_space<smem>>, %arg6: memref<5xi32, #tpu.memory_space<smem>>, %arg7: memref<5xi32, #tpu.memory_space<smem>>) -> (i32, i32) {
    %c0_i32 = arith.constant 0 : i32
    %c0_i32_0 = arith.constant 0 : i32
    return %arg0, %c0_i32 : i32, i32
  }
  func.func @transform_1(%arg0: i32, %arg1: i32, %arg2: memref<5xi32, #tpu.memory_space<smem>>, %arg3: memref<5xi32, #tpu.memory_space<smem>>, %arg4: memref<5xi32, #tpu.memory_space<smem>>, %arg5: memref<5xi32, #tpu.memory_space<smem>>, %arg6: memref<5xi32, #tpu.memory_space<smem>>, %arg7: memref<5xi32, #tpu.memory_space<smem>>) -> (i32, i32, i32) {
    %c0_i32 = arith.constant 0 : i32
    %c0_i32_0 = arith.constant 0 : i32
    %c0_i32_1 = arith.constant 0 : i32
    return %arg1, %c0_i32, %c0_i32_0 : i32, i32, i32
  }
  func.func @transform_2(%arg0: i32, %arg1: i32, %arg2: memref<5xi32, #tpu.memory_space<smem>>, %arg3: memref<5xi32, #tpu.memory_space<smem>>, %arg4: memref<5xi32, #tpu.memory_space<smem>>, %arg5: memref<5xi32, #tpu.memory_space<smem>>, %arg6: memref<5xi32, #tpu.memory_space<smem>>, %arg7: memref<5xi32, #tpu.memory_space<smem>>) -> (i32, i32, i32) {
    %0 = arith.index_cast %arg1 : i32 to index
    %1 = memref.load %arg7[%0] : memref<5xi32, #tpu.memory_space<smem>>
    %c0_i32 = arith.constant 0 : i32
    %c0_i32_0 = arith.constant 0 : i32
    %c0_i32_1 = arith.constant 0 : i32
    return %1, %c0_i32, %c0_i32_0 : i32, i32, i32
  }
  func.func @transform_3(%arg0: i32, %arg1: i32, %arg2: memref<5xi32, #tpu.memory_space<smem>>, %arg3: memref<5xi32, #tpu.memory_space<smem>>, %arg4: memref<5xi32, #tpu.memory_space<smem>>, %arg5: memref<5xi32, #tpu.memory_space<smem>>, %arg6: memref<5xi32, #tpu.memory_space<smem>>, %arg7: memref<5xi32, #tpu.memory_space<smem>>) -> (i32, i32) {
    %c0_i32 = arith.constant 0 : i32
    %c0_i32_0 = arith.constant 0 : i32
    return %arg0, %c0_i32 : i32, i32
  }
}

</mosaic_0001>

<llo_original>
// kernel: tpu_custom_call.1
$region0: #{tpu_custom_call.1}
  #allocation0 [shape = 'u32[]', space=smem, size = 0x4, offset = 0x4, fixed_abs, tag = 'smem constant byte address 0x4 - core index']
  #allocation1 [shape = 'u32[144,128]{1,0:T(1,128)}', space=vmem, size = 0x12000, scoped, tag = 'internal scratch']
  #allocation2 [shape = 'bf16[32,256]{1,0:T(16,128)(2,1)}', space=vmem, size = 0x4000, scoped, tag = 'scratch operand']
  #allocation3 [shape = 'f32[16,128]{1,0:T(8,128)}', space=vmem, size = 0x2000, scoped, tag = 'scratch operand']
  #allocation4 [shape = 's32[1]{0}', space=sflag, size = 0x4, scoped, tag = 'scoped memory for tpu_custom_call.1']
  #allocation5 [shape = 'u8[512]{0}', space=smem, size = 0x200, scoped, tag = 'prefetched SMEM operand 0']
  #allocation6 [shape = 'u8[512]{0}', space=smem, size = 0x200, scoped, tag = 'prefetched SMEM operand 1']
  #allocation7 [shape = 'u8[512]{0}', space=smem, size = 0x200, scoped, tag = 'prefetched SMEM operand 2']
  #allocation8 [shape = 'u8[512]{0}', space=smem, size = 0x200, scoped, tag = 'prefetched SMEM operand 3']
  #allocation9 [shape = 'u8[512]{0}', space=smem, size = 0x200, scoped, tag = 'prefetched SMEM operand 4']
  #allocation10 [shape = 'u8[512]{0}', space=smem, size = 0x200, scoped, tag = 'prefetched SMEM operand 5']
  %s0 = inlined_call_operand.hbm [shape: s32[5], index: 0, kind: input, shape index: {}]
  %s1 = inlined_call_operand.vmem [shape: s32[5], index: 1, kind: input, shape index: {}]
  %s2 = inlined_call_operand.vmem [shape: s32[5], index: 2, kind: input, shape index: {}]
  %s3 = inlined_call_operand.vmem [shape: s32[5], index: 3, kind: input, shape index: {}]
  %s4 = inlined_call_operand.hbm [shape: s32[5], index: 4, kind: input, shape index: {}]
  %s5 = inlined_call_operand.vmem [shape: s32[5], index: 5, kind: input, shape index: {}]
  %s6 = inlined_call_operand.vmem [shape: bf16[16,128], index: 6, kind: input, shape index: {}]
  %s7 = inlined_call_operand.hbm [shape: bf16[5,128,128], index: 7, kind: input, shape index: {}]
  %s8 = inlined_call_operand.vmem [shape: f32[4,1,128], index: 8, kind: input, shape index: {}]
  %s9 = inlined_call_operand.hbm [shape: f32[16,128], index: 9, kind: output, shape index: {}]
  %s10 = sld [smem:[#allocation0]]
  $region69: #{tpu_custom_call.1} parent=0
    _
  %s12 = ssub.s32 1, %s10
  %s13 = scalar_select 0, %s12, %s10
  %15 = dma.hbm_to_smem %s0, 16, [#allocation5], [#allocation4]
  %s16 = sshll.u32 %s1, 4
  %s17 = int_to_ptr.vmem [resolvable:$true] %s16
  %19 = dma.vmem_to_smem %s17, 16, [#allocation6], [#allocation4]
  %s20 = sshll.u32 %s2, 4
  %s21 = int_to_ptr.vmem [resolvable:$true] %s20
  %23 = dma.vmem_to_smem %s21, 16, [#allocation7], [#allocation4]
  %s24 = sshll.u32 %s3, 4
  %s25 = int_to_ptr.vmem [resolvable:$true] %s24
  %27 = dma.vmem_to_smem %s25, 16, [#allocation8], [#allocation4]
  %29 = dma.hbm_to_smem %s4, 16, [#allocation9], [#allocation4]
  %s30 = sshll.u32 %s5, 4
  %s31 = int_to_ptr.vmem [resolvable:$true] %s30
  %33 = dma.vmem_to_smem %s31, 16, [#allocation10], [#allocation4]
  %34 = dma.done [#allocation4], 96
  %35 = sfence
  $region1: #{tpu_custom_call.1} parent=0
    #allocation11 [shape = 'u8[65536]{0}', space=vmem, size = 0x10000, scoped, tag = 'input window, operand 7']
    #allocation12 [shape = 's32[2]{0}', space=sflag, size = 0x8, scoped, tag = 'scoped memory for tpu_custom_call.1']
    #allocation13 [shape = 's32[2]{0}', space=sflag, size = 0x8, scoped, tag = 'scoped memory for tpu_custom_call.1']
    #allocation14 [shape = 'u8[8192]{0}', space=vmem, size = 0x2000, scoped, tag = 'output window, operand 0, single buffered']
    %36 = vsyncpa [#allocation12], 0
    %s37 = scalar_lea.sflag [#allocation12], 1
    %38 = vsyncpa %s37, 0
    %39 = vsyncpa [#allocation13], 0
    loop: start=0, step=1, limit=7
    $region2: #{tpu_custom_call.1} parent=1 // loop_pre_header
      _
    $region3: #{tpu_custom_call.1} parent=1 // loop_header
      %s41 = sphi 0, %s45
      %p42 = scmp.ge.s32.totalorder %s41, 7
      %s48 = sphi 0, %s60
      %s49 = sphi 0, %s56
      %s50 = sphi 0, %s48
      %s51 = sphi 0, %s49
      %s52 = sphi 0, %s50
      %s53 = sphi 0, %s51
      %s63 = sphi 0, %s65
      %s66 = sphi 0, %s63
      %s67 = sphi 0, %s66
      %s83 = sphi 0, %s67
      %s89 = sphi 0, %s91
      %s92 = sphi 0, %s89
      %s93 = sphi 0, %s92
      %s109 = sphi 0, %s93
      %s117 = sphi 0, %s119
      %s120 = sphi 0, %s117
      %s121 = sphi 0, %s120
      %s137 = sphi 0, %s121
      %s143 = sphi 0, %s145
      %s146 = sphi 0, %s143
      %s147 = sphi 0, %s146
      %s163 = sphi 0, %s147
    $region4: #{tpu_custom_call.1} parent=1 // loop_header_branch
      %44 = sbr.rel (%p42) target = $region8
    $region5: #{tpu_custom_call.1} parent=1 // loop_body
      %s46 = ssub.s32 %s41, 1
      %s47 = ssub.s32 %s41, 2
      %s54 = sadd.s32 1, %s49
      %p55 = scmp.ge.s32.totalorder %s54, 5
      %s56 = scalar_select %p55, 0, %s54
      %s57 = sadd.s32 1, %s48
      %s58 = scalar_select %p55, %s57, %s48
      %p59 = scmp.ge.s32.totalorder %s58, 1
      %s60 = scalar_select %p59, 0, %s58
      %s61 = ssub.s32 %s48, %s60
      %p62 = scmp.eq.s32.totalorder %s61, 0
      %s64 = sadd.s32 %s63, 1
      %s65 = scalar_select %p62, %s63, %s64
      %p68 = pneg %p62
      %p69 = scmp.eq.s32.totalorder %s41, 4
      %p70 = por %p68, %p69
      %p71 = scmp.ne.s32.totalorder %s63, %s66
      %p72 = scmp.eq.s32.totalorder %s41, 0
      %p73 = por %p71, %p72
      %p74 = scmp.ne.s32.totalorder %s63, %s66
      %p75 = scmp.eq.s32.totalorder %s46, 4
      %p76 = por %p74, %p75
      %p77 = scmp.ne.s32.totalorder %s66, %s67
      %p78 = scmp.eq.s32.totalorder %s46, 0
      %p79 = por %p77, %p78
      %p80 = scmp.ne.s32.totalorder %s66, %s67
      %p81 = scmp.eq.s32.totalorder %s47, 4
      %p82 = por %p80, %p81
      %p84 = scmp.ne.s32.totalorder %s67, %s83
      %p85 = scmp.eq.s32.totalorder %s47, 0
      %p86 = por %p84, %p85
      %s87 = ssub.s32 %s49, %s56
      %p88 = scmp.eq.s32.totalorder %s87, 0
      %s90 = sadd.s32 %s89, 1
      %s91 = scalar_select %p88, %s89, %s90
      %p94 = pneg %p88
      %p95 = scmp.eq.s32.totalorder %s41, 4
      %p96 = por %p94, %p95
      %p97 = scmp.ne.s32.totalorder %s89, %s92
      %p98 = scmp.eq.s32.totalorder %s41, 0
      %p99 = por %p97, %p98
      %p100 = scmp.ne.s32.totalorder %s89, %s92
      %p101 = scmp.eq.s32.totalorder %s46, 4
      %p102 = por %p100, %p101
      %p103 = scmp.ne.s32.totalorder %s92, %s93
      %p104 = scmp.eq.s32.totalorder %s46, 0
      %p105 = por %p103, %p104
      %p106 = scmp.ne.s32.totalorder %s92, %s93
      %p107 = scmp.eq.s32.totalorder %s47, 4
      %p108 = por %p106, %p107
      %p110 = scmp.ne.s32.totalorder %s93, %s109
      %p111 = scmp.eq.s32.totalorder %s47, 0
      %p112 = por %p110, %p111
      %s113 = sld [smem:[#allocation10 + %s49]]
      %s114 = sld [smem:[#allocation10 + %s56]]
      %s115 = ssub.s32 %s113, %s114
      %p116 = scmp.eq.s32.totalorder %s115, 0
      %s118 = sadd.s32 %s117, 1
      %s119 = scalar_select %p116, %s117, %s118
      %p122 = pneg %p116
      %p123 = scmp.eq.s32.totalorder %s41, 4
      %p124 = por %p122, %p123
      %p125 = scmp.ne.s32.totalorder %s117, %s120
      %p126 = scmp.eq.s32.totalorder %s41, 0
      %p127 = por %p125, %p126
      %p128 = scmp.ne.s32.totalorder %s117, %s120
      %p129 = scmp.eq.s32.totalorder %s46, 4
      %p130 = por %p128, %p129
      %p131 = scmp.ne.s32.totalorder %s120, %s121
      %p132 = scmp.eq.s32.totalorder %s46, 0
      %p133 = por %p131, %p132
      %p134 = scmp.ne.s32.totalorder %s120, %s121
      %p135 = scmp.eq.s32.totalorder %s47, 4
      %p136 = por %p134, %p135
      %p138 = scmp.ne.s32.totalorder %s121, %s137
      %p139 = scmp.eq.s32.totalorder %s47, 0
      %p140 = por %p138, %p139
      %s141 = ssub.s32 %s48, %s60
      %p142 = scmp.eq.s32.totalorder %s141, 0
      %s144 = sadd.s32 %s143, 1
      %s145 = scalar_select %p142, %s143, %s144
      %p148 = pneg %p142
      %p149 = scmp.eq.s32.totalorder %s41, 4
      %p150 = por %p148, %p149
      %p151 = scmp.ne.s32.totalorder %s143, %s146
      %p152 = scmp.eq.s32.totalorder %s41, 0
      %p153 = por %p151, %p152
      %p154 = scmp.ne.s32.totalorder %s143, %s146
      %p155 = scmp.eq.s32.totalorder %s46, 4
      %p156 = por %p154, %p155
      %p157 = scmp.ne.s32.totalorder %s146, %s147
      %p158 = scmp.eq.s32.totalorder %s46, 0
      %p159 = por %p157, %p158
      %p160 = scmp.ne.s32.totalorder %s146, %s147
      %p161 = scmp.eq.s32.totalorder %s47, 4
      %p162 = por %p160, %p161
      %p164 = scmp.ne.s32.totalorder %s147, %s163
      %p165 = scmp.eq.s32.totalorder %s47, 0
      %p166 = por %p164, %p165
      %p167 = scmp.le.s32.totalorder 1, %s41
      %p168 = scmp.lt.s32.totalorder %s41, 6
      %p169 = pnand %p167, %p168
      %p170 = pneg %p169
      // Predicated region
      $region9: #{tpu_custom_call.1} parent=5 // pred_check
        _
      $region10: #{tpu_custom_call.1} parent=5 // pred_check_branch
        %172 = sbr.rel (%p169) target = $region12
      $region11: #{tpu_custom_call.1} parent=5 // pred_region
        %s173 = ssub.s32 %s41, 1
        // Predicated region
        $region13: #{tpu_custom_call.1} parent=11 // pred_check
          %p174 = pneg %p79
        $region14: #{tpu_custom_call.1} parent=11 // pred_check_branch
          %176 = sbr.rel (%p174) target = $region16
        $region15: #{tpu_custom_call.1} parent=11 // pred_region
          %s177 = smul.u32 2, %s50
          %p178 = scmp.lt.s32.totalorder %s177, 1
          %s179 = scalar_select %p178, %s177, 1
          %s180 = smul.addr %s179, 4
          %s181 = scalar_lea.vmem %s6, %s180
          %s182 = smul.u32 2, %s50
        $region16: #{tpu_custom_call.1} parent=11 // pred_fallthru
          _
      $region12: #{tpu_custom_call.1} parent=5 // pred_fallthru
        _
      %p183 = scmp.lt.s32.totalorder %s41, 5
      // Predicated region
      $region17: #{tpu_custom_call.1} parent=5 // pred_check
        %p184 = pneg %p183
      $region18: #{tpu_custom_call.1} parent=5 // pred_check_branch
        %186 = sbr.rel (%p184) target = $region20
      $region19: #{tpu_custom_call.1} parent=5 // pred_region
        // Predicated region
        $region21: #{tpu_custom_call.1} parent=19 // pred_check
          %p187 = pneg %p99
        $region22: #{tpu_custom_call.1} parent=19 // pred_check_branch
          %189 = sbr.rel (%p187) target = $region24
        $region23: #{tpu_custom_call.1} parent=19 // pred_region
          %s190 = sand.u32 %s89, 1
          %s191 = scalar_lea.sflag [#allocation12], %s190
          %s192 = sand.u32 %s89, 1
          %s193 = smul.addr %s192, 64
          %s194 = scalar_lea.vmem [#allocation11], %s193
          %s196 = ssub.s32 1024, 1024
          %197 = vsyncadd %s191, %s196
          %s198 = smul.addr %s49, 16
          %s199 = smul.addr %s198, 64
          %s200 = scalar_lea.hbm %s7, %s199
          %s201 = sshll.u32 %s194, 4
          %s202 = int_to_ptr.vmem [resolvable:$true] %s201
          %207 = dma.hbm_to_vmem [thread:$0]  %s200, 1024, %s202, %s191, 64, 64, 4
        $region24: #{tpu_custom_call.1} parent=19 // pred_fallthru
          _
        // Predicated region
        $region25: #{tpu_custom_call.1} parent=19 // pred_check
          %p208 = pneg %p127
        $region26: #{tpu_custom_call.1} parent=19 // pred_check_branch
          %210 = sbr.rel (%p208) target = $region28
        $region27: #{tpu_custom_call.1} parent=19 // pred_region
          %s211 = sld [smem:[#allocation10 + %s49]]
          %p212 = scmp.lt.s32.totalorder %s211, 3
          %s213 = scalar_select %p212, %s211, 3
          %s214 = scalar_lea.vmem %s8, %s213
          %s215 = sld [smem:[#allocation10 + %s49]]
        $region28: #{tpu_custom_call.1} parent=19 // pred_fallthru
          _
      $region20: #{tpu_custom_call.1} parent=5 // pred_fallthru
        _
      %p216 = scmp.le.s32.totalorder 1, %s41
      %p217 = scmp.lt.s32.totalorder %s41, 6
      %p218 = pnand %p216, %p217
      %p219 = pneg %p218
      // Predicated region
      $region29: #{tpu_custom_call.1} parent=5 // pred_check
        _
      $region30: #{tpu_custom_call.1} parent=5 // pred_check_branch
        %221 = sbr.rel (%p218) target = $region32
      $region31: #{tpu_custom_call.1} parent=5 // pred_region
        %s222 = ssub.s32 %s41, 1
        %s223 = sand.u32 %s92, 1
        %s224 = scalar_lea.sflag [#allocation12], %s223
        %s225 = sand.u32 %s92, 1
        %s226 = smul.addr %s225, 64
        %s227 = scalar_lea.vmem [#allocation11], %s226
        // Predicated region
        $region33: #{tpu_custom_call.1} parent=31 // pred_check
          %p228 = pneg %p105
        $region34: #{tpu_custom_call.1} parent=31 // pred_check_branch
          %230 = sbr.rel (%p228) target = $region36
        $region35: #{tpu_custom_call.1} parent=31 // pred_region
          %231 = dma.done %s224, 1024
        $region36: #{tpu_custom_call.1} parent=31 // pred_fallthru
          _
        %s232 = smul.u32 2, %s50
        %p233 = scmp.lt.s32.totalorder %s232, 1
        %s234 = scalar_select %p233, %s232, 1
        %s235 = smul.addr %s234, 4
        %s236 = scalar_lea.vmem %s6, %s235
        %p237 = pneg %p79
        %p238 = pneg %p76
        %s239 = sand.u32 %s92, 1
        %s240 = scalar_lea.sflag [#allocation12], %s239
        %s241 = sand.u32 %s92, 1
        %s242 = smul.addr %s241, 64
        %s243 = scalar_lea.vmem [#allocation11], %s242
        %p244 = pneg %p105
        %p245 = pneg %p102
        %s246 = sld [smem:[#allocation10 + %s51]]
        %p247 = scmp.lt.s32.totalorder %s246, 3
        %s248 = scalar_select %p247, %s246, 3
        %s249 = scalar_lea.vmem %s8, %s248
        %p250 = pneg %p133
        %p251 = pneg %p130
        %p252 = pneg %p159
        %p253 = pneg %p156
        %s254 = smul.u32 2, %s50
        %p255 = scmp.lt.s32.totalorder %s254, 1
        %s256 = scalar_select %p255, %s254, 1
        %s257 = smul.addr %s256, 4
        %s258 = scalar_lea.vmem %s6, %s257
        %s259 = smul.u32 2, %s50
        %s260 = sld [smem:[#allocation10 + %s51]]
        %p261 = scmp.lt.s32.totalorder %s260, 3
        %s262 = scalar_select %p261, %s260, 3
        %s263 = scalar_lea.vmem %s8, %s262
        %s264 = sld [smem:[#allocation10 + %s51]]
        %s265 = smul.u32 2, %s50
        %s267 = sld [smem:[#allocation5 + %s51]]
        %s268 = sld [smem:[#allocation6 + %s51]]
        %s269 = sld [smem:[#allocation7 + %s51]]
        %s270 = sld [smem:[#allocation8 + %s51]]
        %p271 = scmp.eq.s32.totalorder %s270, 1
        %s272 = sld [smem:[#allocation9 + %s51]]
        %p273 = scmp.eq.s32.totalorder %s272, 1
        %p274 = scmp.eq.s32.totalorder %s51, 0
        // Predicated region
        $region37: #{tpu_custom_call.1} parent=31 // pred_check
          %p275 = pneg %p274
        $region38: #{tpu_custom_call.1} parent=31 // pred_check_branch
          %277 = sbr.rel (%p275) target = $region40
        $region39: #{tpu_custom_call.1} parent=31 // pred_region
          %v278 = vld [vmem:[%s258] sm:$0xf]
          %v279 = vld [vmem:[%s258 + $0x4] sm:$0xf]
          %v282 = vunpack.c.l.b16 %v278
          %v283 = vunpack.c.l.b16 %v279
          %v284 = vpack.c.b16 %v283, %v282
          %286 = vst [vmem:[#allocation2] sm:$0xff] %v284
        $region40: #{tpu_custom_call.1} parent=31 // pred_fallthru
          _
        %s287 = smul.u32 %s269, 16
        %s288 = smul.u32 %s267, 128
        %s289 = sshra.s32 %s288, 7
        %s290 = sand.u32 %s288, 127
        %s291 = sshra.s32 %s287, 4
        %s292 = sand.u32 %s287, 15
        %s293 = smul.u32 %s291, 2
        %s294 = sadd.s32 %s289, %s293
        %s295 = smul.addr %s294, 8
        %s296 = scalar_lea.vmem [#allocation2], %s295
        %v297 = vld [vmem:[%s296] sm:$0xff]
        %p298 = scmp.eq.s32.totalorder %s267, 0
        // Predicated region
        $region41: #{tpu_custom_call.1} parent=31 // pred_check
          %p299 = pneg %p298
        $region42: #{tpu_custom_call.1} parent=31 // pred_check_branch
          %301 = sbr.rel (%p299) target = $region44
        $region43: #{tpu_custom_call.1} parent=31 // pred_region
          %302 = vst [vmem:[#allocation3] sm:$0xff] 0.0
          %303 = vst [vmem:[#allocation3 + $0x8] sm:$0xff] 0.0
        $region44: #{tpu_custom_call.1} parent=31 // pred_fallthru
          _
        %v304 = vld [vmem:[#allocation3] sm:$0xff]
        %v305 = vld [vmem:[#allocation3 + $0x8] sm:$0xff]
        %v306 = vld [vmem:[%s227] sm:$0xf]
        %v307 = vld [vmem:[%s227 + $0x4] sm:$0xf]
        %v308 = vld [vmem:[%s227 + $0x8] sm:$0xf]
        %v309 = vld [vmem:[%s227 + $0xc] sm:$0xf]
        %v310 = vld [vmem:[%s227 + $0x10] sm:$0xf]
        %v311 = vld [vmem:[%s227 + $0x14] sm:$0xf]
        %v312 = vld [vmem:[%s227 + $0x18] sm:$0xf]
        %v313 = vld [vmem:[%s227 + $0x1c] sm:$0xf]
        %v314 = vld [vmem:[%s227 + $0x20] sm:$0xf]
        %v315 = vld [vmem:[%s227 + $0x24] sm:$0xf]
        %v316 = vld [vmem:[%s227 + $0x28] sm:$0xf]
        %v317 = vld [vmem:[%s227 + $0x2c] sm:$0xf]
        %v318 = vld [vmem:[%s227 + $0x30] sm:$0xf]
        %v319 = vld [vmem:[%s227 + $0x34] sm:$0xf]
        %v320 = vld [vmem:[%s227 + $0x38] sm:$0xf]
        %v321 = vld [vmem:[%s227 + $0x3c] sm:$0xf]
        %v338 = vunpack.c.l.b16 %v306
        %v339 = vunpack.c.l.b16 %v307
        %v340 = vunpack.c.l.b16 %v308
        %v341 = vunpack.c.l.b16 %v309
        %v342 = vunpack.c.l.b16 %v310
        %v343 = vunpack.c.l.b16 %v311
        %v344 = vunpack.c.l.b16 %v312
        %v345 = vunpack.c.l.b16 %v313
        %v346 = vunpack.c.l.b16 %v314
        %v347 = vunpack.c.l.b16 %v315
        %v348 = vunpack.c.l.b16 %v316
        %v349 = vunpack.c.l.b16 %v317
        %v350 = vunpack.c.l.b16 %v318
        %v351 = vunpack.c.l.b16 %v319
        %v352 = vunpack.c.l.b16 %v320
        %v353 = vunpack.c.l.b16 %v321
        %v354 = vpack.c.b16 %v339, %v338
        %v355 = vpack.c.b16 %v341, %v340
        %v356 = vpack.c.b16 %v343, %v342
        %v357 = vpack.c.b16 %v345, %v344
        %v358 = vpack.c.b16 %v347, %v346
        %v359 = vpack.c.b16 %v349, %v348
        %v360 = vpack.c.b16 %v351, %v350
        %v361 = vpack.c.b16 %v353, %v352
        %370 = vmatprep.subr.bf16.mxu0 0
        %371 = vmatpush1.bf16.msra.mxu0 %v354
        %372 = vmatprep.subr.bf16.mxu0 0
        %373 = vmatpush1.bf16.msra.mxu0 %v355
        %374 = vmatprep.subr.bf16.mxu0 0
        %375 = vmatpush1.bf16.msra.mxu0 %v356
        %376 = vmatprep.subr.bf16.mxu0 0
        %377 = vmatpush1.bf16.msra.mxu0 %v357
        %378 = vmatprep.subr.bf16.mxu0 0
        %379 = vmatpush1.bf16.msra.mxu0 %v358
        %380 = vmatprep.subr.bf16.mxu0 0
        %381 = vmatpush1.bf16.msra.mxu0 %v359
        %382 = vmatprep.subr.bf16.mxu0 0
        %383 = vmatpush1.bf16.msra.mxu0 %v360
        %384 = vmatprep.subr.bf16.mxu0 0
        %385 = vmatpush1.bf16.msra.mxu0 %v361
        %386 = vmatprep.subr.bf16.mxu0 0
        %387 = vmatpush1.bf16.msra.mxu0 0
        %388 = vmatprep.subr.bf16.mxu0 0
        %389 = vmatpush1.bf16.msra.mxu0 0
        %390 = vmatprep.subr.bf16.mxu0 0
        %391 = vmatpush1.bf16.msra.mxu0 0
        %392 = vmatprep.subr.bf16.mxu0 0
        %393 = vmatpush1.bf16.msra.mxu0 0
        %394 = vmatprep.subr.bf16.mxu0 0
        %395 = vmatpush1.bf16.msra.mxu0 0
        %396 = vmatprep.subr.bf16.mxu0 0
        %397 = vmatpush1.bf16.msra.mxu0 0
        %398 = vmatprep.subr.bf16.mxu0 0
        %399 = vmatpush1.bf16.msra.mxu0 0
        %400 = vmatprep.subr.bf16.mxu0 0
        %401 = vmatpush1.bf16.msra.mxu0 0
        %402 = vmatprep.mubr.bf16.mxu0 0
        %403 = vmatmul.mubr.bf16.gmra.mrb[0].mxu0 %v297
        %v404 = vpop.f32.mrb[0].mxu0
        %v405 = vadd.f32 0.0, %v404
        %v406 = vpop.f32.mrb[0].mxu0
        %v407 = vpop.f32.mrb[0].mxu0
        %v408 = vadd.f32 0.0, %v407
        %v409 = vpop.f32.mrb[0].mxu0
        %410 = vdwg.mxu0
        %v411 = vadd.f32 %v304, %v405
        %v412 = vadd.f32 %v305, %v408
        %413 = vst [vmem:[#allocation3] sm:$0xff] %v411
        %414 = vst [vmem:[#allocation3 + $0x8] sm:$0xff] %v412
        // Predicated region
        $region45: #{tpu_custom_call.1} parent=31 // pred_check
          %p415 = pneg %p271
        $region46: #{tpu_custom_call.1} parent=31 // pred_check_branch
          %417 = sbr.rel (%p415) target = $region48
        $region47: #{tpu_custom_call.1} parent=31 // pred_region
          %v418 = vld [vmem:[#allocation3] sm:$0xff]
          %v419 = vld [vmem:[#allocation3 + $0x8] sm:$0xff]
          %v420 = vld [vmem:[%s263] sm:$0x1]
          %v422 = vlaneseq
          %v423 = vshrl.u32 %v422, 7
          %v424 = vsub.s32 0, %v423
          %v425 = vrot.slane %v420, %v424
          %v427 = vadd.f32 %v418, %v425
          %v428 = vadd.f32 %v419, %v425
          %v429 = vmax.f32 %v427, 0.0
          %v430 = vmax.f32 %v428, 0.0
          %s431 = smul.u32 %s268, 128
          %p432 = scmp.ne.s32.totalorder %s272, 1
          // Predicated region
          $region49: #{tpu_custom_call.1} parent=47 // pred_check
            %p433 = pneg %p432
          $region50: #{tpu_custom_call.1} parent=47 // pred_check_branch
            %435 = sbr.rel (%p433) target = $region52
          $region51: #{tpu_custom_call.1} parent=47 // pred_region
            %s436 = ssub.s32 1, %s269
            %s437 = smul.u32 %s436, 16
            %v438 = vpack.c.bf16 %v430, %v429
            %s439 = sshra.s32 %s431, 7
            %s440 = sand.u32 %s431, 127
            %s441 = sshra.s32 %s437, 4
            %s442 = sand.u32 %s437, 15
            %s443 = smul.u32 %s441, 2
            %s444 = sadd.s32 %s439, %s443
            %s445 = smul.addr %s444, 8
            %s446 = scalar_lea.vmem [#allocation2], %s445
            %447 = vst [vmem:[%s446] sm:$0xff] %v438
          $region52: #{tpu_custom_call.1} parent=47 // pred_fallthru
            _
          // Predicated region
          $region53: #{tpu_custom_call.1} parent=47 // pred_check
            %p448 = pneg %p273
          $region54: #{tpu_custom_call.1} parent=47 // pred_check_branch
            %450 = sbr.rel (%p448) target = $region56
          $region55: #{tpu_custom_call.1} parent=47 // pred_region
            %s451 = sshra.s32 %s431, 7
            %s452 = sand.u32 %s431, 127
            %s453 = scalar_lea.vmem [#allocation14], %s451
            %454 = vst [vmem:[%s453] sm:$0xff] %v429
            %455 = vst [vmem:[%s453 + $0x8] sm:$0xff] %v430
          $region56: #{tpu_custom_call.1} parent=47 // pred_fallthru
            _
        $region48: #{tpu_custom_call.1} parent=31 // pred_fallthru
          _
        // Predicated region
        $region57: #{tpu_custom_call.1} parent=31 // pred_check
          %p456 = pneg %p156
        $region58: #{tpu_custom_call.1} parent=31 // pred_check_branch
          %458 = sbr.rel (%p456) target = $region60
        $region59: #{tpu_custom_call.1} parent=31 // pred_region
          %s459 = smul.u32 2, %s50
          %s461 = ssub.s32 256, 256
          %462 = vsyncadd [#allocation13], %s461
          %s463 = smul.addr %s459, 128
          %s464 = scalar_lea.hbm %s9, %s463
          %s465 = sshll.u32 [#allocation14], 4
          %s466 = int_to_ptr.vmem [resolvable:$true] %s465
          %471 = dma.vmem_to_hbm [thread:$0]  %s466, 256, %s464, [#allocation13], 128, 128, 8
        $region60: #{tpu_custom_call.1} parent=31 // pred_fallthru
          _
        // Predicated region
        $region61: #{tpu_custom_call.1} parent=31 // pred_check
          %p472 = pneg %p156
        $region62: #{tpu_custom_call.1} parent=31 // pred_check_branch
          %474 = sbr.rel (%p472) target = $region64
        $region63: #{tpu_custom_call.1} parent=31 // pred_region
          %475 = dma.done [#allocation13], 256
        $region64: #{tpu_custom_call.1} parent=31 // pred_fallthru
          _
      $region32: #{tpu_custom_call.1} parent=5 // pred_fallthru
        _
      %p476 = scmp.le.s32.totalorder 2, %s41
      // Predicated region
      $region65: #{tpu_custom_call.1} parent=5 // pred_check
        %p477 = pneg %p476
      $region66: #{tpu_custom_call.1} parent=5 // pred_check_branch
        %479 = sbr.rel (%p477) target = $region68
      $region67: #{tpu_custom_call.1} parent=5 // pred_region
        %s480 = ssub.s32 %s41, 2
      $region68: #{tpu_custom_call.1} parent=5 // pred_fallthru
        _
    $region6: #{tpu_custom_call.1} parent=1 // loop_footer
      %s45 = sadd.s32 1, %s41
    $region7: #{tpu_custom_call.1} parent=1 // loop_footer_branch
      %40 = sbr.rel target = $region3
    $region8: #{tpu_custom_call.1} parent=1 // loop_exit
      _
    %481 = vsyncpa [#allocation12], 1
    %s482 = scalar_lea.sflag [#allocation12], 1
    %483 = vsyncpa %s482, 1
    %484 = vsyncpa [#allocation13], 1
    %s485 = scalar_lea.sflag [#allocation13], 1
    %486 = vsyncpa %s485, 1

</llo_original>
